<compile_context>
chip_gen: v7x
topology: tpu7x:2x2x1
jax: 0.10.0
libtpu: 0.0.40
codegen_flags: <defaults>
</compile_context>

<pallas_src>
import functools
import math

import jax
import jax.numpy as jnp
from jax.experimental import pallas as pl
from jax.experimental.pallas import tpu as pltpu

_VMEM_LIMIT_BYTES = 32 * 1024 * 1024


def _row_tile(n, max_rows):
    """Largest legal row tile: n itself if it fits, else a 128-multiple divisor."""
    if n <= max_rows:
        return n
    for t in range(max_rows - max_rows % 128, 0, -128):
        if n % t == 0:
            return t
    return n   # fall back to a single (untiled) block


# --------------------------- input-projection kernel ---------------------------
def _linear_kernel(x_ref, w_ref, b_ref, o_ref):
    o_ref[...] = (jnp.dot(x_ref[...], w_ref[...],
                          preferred_element_type=jnp.float32) + b_ref[...])


def input_projection(x, w, b, *, tile_rows=256):
    """Row-tiled y = x @ w + b. x: (N, D), w: (D, K), b: (1, K)."""
    n, d = x.shape
    k = w.shape[1]
    tn = _row_tile(n, tile_rows)
    return pl.pallas_call(
        _linear_kernel,
        out_shape=jax.ShapeDtypeStruct((n, k), jnp.float32),
        grid_spec=pltpu.PrefetchScalarGridSpec(
            num_scalar_prefetch=0,
            grid=(n // tn,),
            in_specs=[pl.BlockSpec((tn, d), lambda i: (i, 0)),
                      pl.BlockSpec((d, k), lambda i: (0, 0)),
                      pl.BlockSpec((1, k), lambda i: (0, 0))],
            out_specs=pl.BlockSpec((tn, k), lambda i: (i, 0)),
        ),
        compiler_params=pltpu.CompilerParams(
            dimension_semantics=("parallel",),
            vmem_limit_bytes=_VMEM_LIMIT_BYTES),
    )(x, w, b)


# --------------------- fused bidirectional LSTM recurrence ---------------------
def _bilstm_rec_kernel(g_ref, whh_ref, out_ref, h_sc, c_sc, *, hidden, seq_len):
    """Both directions packed into one state tile; one matmul + one cell / step.

    g_ref:   (T, B, 8H)  precomputed x@W_ih + b, gate-interleaved columns
                         [i_f i_b f_f f_b g_f g_b o_f o_b].
    whh_ref: (2H, 8H)    block-diagonal recurrent weight (fwd rows 0:H, bwd H:2H).
    out_ref: (T, B, 2H)  packed hidden states [h_fwd | h_bwd].
    """
    H = hidden
    B = h_sc.shape[0]
    h_sc[...] = jnp.zeros_like(h_sc)
    c_sc[...] = jnp.zeros_like(c_sc)
    whh = whh_ref[...]                                   # resident across the loop

    gate_lane = jax.lax.broadcasted_iota(jnp.int32, (B, 8 * H), 1)
    gate_is_fwd = ((gate_lane // H) % 2) == 0            # fwd gate sub-blocks
    out_lane = jax.lax.broadcasted_iota(jnp.int32, (B, 2 * H), 1)
    out_is_fwd = out_lane < H
    out_is_bwd = jnp.logical_not(out_is_fwd)

    @pl.loop(0, seq_len, unroll=True)
    def _(t):
        tb = seq_len - 1 - t
        # fwd sub-blocks take time t, bwd sub-blocks take time T-1-t.
        gate_add = jnp.where(gate_is_fwd, g_ref[t], g_ref[tb])
        pre = gate_add + jnp.dot(h_sc[...], whh,
                                 preferred_element_type=jnp.float32)  # (B, 8H)
        i = jax.nn.sigmoid(pre[:, 0 * H:2 * H])
        f = jax.nn.sigmoid(pre[:, 2 * H:4 * H])
        g = jnp.tanh(pre[:, 4 * H:6 * H])
        o = jax.nn.sigmoid(pre[:, 6 * H:8 * H])
        c = f * c_sc[...] + i * g
        h = o * jnp.tanh(c)
        h_sc[...] = h
        c_sc[...] = c
        # fwd half -> out[t] lanes 0:H, bwd half -> out[T-1-t] lanes H:2H.
        pltpu.store(out_ref.at[t], h, mask=out_is_fwd)
        pltpu.store(out_ref.at[tb], h, mask=out_is_bwd)


def bilstm_recurrence(gates_tbg, w_hh_packed, hidden):
    """gates_tbg: (T, B, 8H) f32 -> packed hidden states (T, B, 2H)."""
    T, B, _ = gates_tbg.shape
    kernel = functools.partial(_bilstm_rec_kernel, hidden=hidden, seq_len=T)
    return pl.pallas_call(
        kernel,
        out_shape=jax.ShapeDtypeStruct((T, B, 2 * hidden), jnp.float32),
        scratch_shapes=[pltpu.VMEM((B, 2 * hidden), jnp.float32),   # h state
                        pltpu.VMEM((B, 2 * hidden), jnp.float32)],  # c state
        compiler_params=pltpu.CompilerParams(
            vmem_limit_bytes=_VMEM_LIMIT_BYTES),
    )(gates_tbg, w_hh_packed)


# ------------------- fused 3-head linear + CE + argmax kernel ------------------
def _stack_cols(pieces):
    """Place (rows, 1) arrays into (rows, len(pieces)) with selects."""
    ncol = len(pieces)
    rows = pieces[0].shape[0]
    col = jax.lax.broadcasted_iota(jnp.int32, (rows, ncol), 1)
    out = jnp.broadcast_to(pieces[-1], (rows, ncol))
    for k in range(ncol - 2, -1, -1):
        out = jnp.where(col == k, pieces[k], out)
    return out


def _heads_kernel(h_ref, w_ref, b_ref, y_ref, loss_ref, pred_ref, *, class_sizes):
    @pl.when(pl.program_id(0) == 0)
    def _():
        loss_ref[...] = jnp.zeros_like(loss_ref)

    # Fused logits for all heads from the single packed (tn, 2H) activation.
    logits = (jnp.dot(h_ref[...], w_ref[...], preferred_element_type=jnp.float32)
              + b_ref[...])                                        # (tn, Ctot)
    y = y_ref[...]                                                 # (tn, nh)
    tn, ctot = logits.shape
    lane = jax.lax.broadcasted_iota(jnp.int32, (tn, ctot), 1)

    pred_cols, ce_sums = [], []
    off = 0
    for k, c in enumerate(class_sizes):
        in_head = jnp.logical_and(lane >= off, lane < off + c)
        wid = lane - off                                   # within-head class id
        lg = jnp.where(in_head, logits, -jnp.inf)
        mx = jnp.max(lg, axis=-1, keepdims=True)           # (tn, 1)
        # first-occurrence argmax within the head
        pred_cols.append(
            jnp.min(jnp.where(lg >= mx, wid, jnp.int32(c)),
                    axis=-1, keepdims=True).astype(jnp.float32))
        # stable cross entropy: logsumexp - picked logit
        e = jnp.where(in_head, jnp.exp(logits - mx), 0.0)
        lse = mx + jnp.log(jnp.sum(e, axis=-1, keepdims=True))
        picked = jnp.sum(
            jnp.where(jnp.logical_and(in_head, wid == y[:, k:k + 1]), logits, 0.0),
            axis=-1, keepdims=True)
        ce_sums.append(jnp.sum(lse - picked, axis=0, keepdims=True))   # (1, 1)
        off += c

    loss_ref[...] = loss_ref[...] + _stack_cols(ce_sums)

    # Lane-dense predictions: (nh, tn).  The (tn, nh) column stack is
    # transposed on the MXU (dot_general against an identity) so the store is
    # tn lanes wide instead of an nh-wide masked partial store.
    preds = _stack_cols(pred_cols)                          # (tn, nh) f32
    rid = jax.lax.broadcasted_iota(jnp.int32, (tn, tn), 0)
    cid = jax.lax.broadcasted_iota(jnp.int32, (tn, tn), 1)
    ident = (rid == cid).astype(jnp.float32)
    pred_t = jax.lax.dot_general(preds, ident, (((0,), (0,)), ((), ())),
                                 preferred_element_type=jnp.float32)  # (nh, tn)
    pred_ref[...] = pred_t.astype(jnp.int32)


def heads_forward(h, w, b, y_stack, class_sizes, *, tile_rows=256):
    n, hdim = h.shape
    ctot = b.shape[1]
    nh = len(class_sizes)
    tn = _row_tile(n, tile_rows)
    kernel = functools.partial(_heads_kernel, class_sizes=tuple(class_sizes))
    return pl.pallas_call(
        kernel,
        out_shape=(jax.ShapeDtypeStruct((1, nh), jnp.float32),      # CE sums
                   jax.ShapeDtypeStruct((nh, n), jnp.int32)),       # preds (lane-dense)
        grid_spec=pltpu.PrefetchScalarGridSpec(
            num_scalar_prefetch=0,
            grid=(n // tn,),
            in_specs=[pl.BlockSpec((tn, hdim), lambda i: (i, 0)),
                      pl.BlockSpec((hdim, ctot), lambda i: (0, 0)),
                      pl.BlockSpec((1, ctot), lambda i: (0, 0)),
                      pl.BlockSpec((tn, nh), lambda i: (i, 0))],
            out_specs=[pl.BlockSpec((1, nh), lambda i: (0, 0)),      # accumulator
                       pl.BlockSpec((nh, tn), lambda i: (0, i))],
        ),
        # "arbitrary": the loss block is revisited/accumulated sequentially.
        compiler_params=pltpu.CompilerParams(
            dimension_semantics=("arbitrary",),
            vmem_limit_bytes=_VMEM_LIMIT_BYTES),
    )(h, w, b, y_stack)


# ------------------------------------ forward ----------------------------------
def bilstm_forward(params, x_ids, y1, y2, y3, mask):
    del mask  # see NOTE at top: the original loss ends up mask-independent
    B, T = x_ids.shape
    N = B * T
    n_classes = params["n_classes"]

    # Embedding gather (XLA), directly in time-major flat layout (row = t*B + b).
    h = params["embed"][x_ids.T].reshape(N, -1)            # (N, E)
    # dropout = identity (eval mode)

    for layer in params["lstm"]:
        hidden = layer["hidden"]
        # Hoisted input projection for all T steps and both directions at once.
        gates = input_projection(h, layer["w_ih"], layer["b"])        # (N, 8H)
        out = bilstm_recurrence(gates.reshape(T, B, -1), layer["w_hh"], hidden)
        h = out.reshape(N, 2 * hidden)                                # [fwd | bwd]

    y_stack = jnp.stack([y1.T.reshape(-1), y2.T.reshape(-1), y3.T.reshape(-1)],
                        axis=1).astype(jnp.int32)                     # (N, 3)
    loss_sums, preds_hn = heads_forward(h, params["head_w"], params["head_b"],
                                        y_stack, n_classes)

    # legacy reduce='none' -> reduction='mean': unmasked mean over all B*T.
    losses = [loss_sums[0, k] / N for k in range(len(n_classes))]
    preds = [preds_hn[k].reshape(T, B).T for k in range(len(n_classes))]
    return losses, preds


# ---------------------------------- param init ----------------------------------
def init_params(key, vocab, embed_dim, hidden, n_layer, n_classes):
    H = hidden
    n_heads = len(n_classes)
    keys = iter(jax.random.split(key, 1 + 8 * n_layer + n_heads))
    params = {
        "embed": jax.random.normal(next(keys), (vocab, embed_dim),
                                   jnp.float32) * 0.1,
        "n_classes": tuple(int(c) for c in n_classes),
    }

    k = 1.0 / math.sqrt(H)
    lstm = []
    in_dim = embed_dim
    for _layer in range(n_layer):
        per_dir = []
        for _d in range(2):                              # 0 = fwd, 1 = bwd
            w_ih = jax.random.uniform(next(keys), (in_dim, 4 * H),
                                      minval=-k, maxval=k)
            w_hh = jax.random.uniform(next(keys), (H, 4 * H),
                                      minval=-k, maxval=k)
            b_ih = jax.random.uniform(next(keys), (1, 4 * H),
                                      minval=-k, maxval=k)
            b_hh = jax.random.uniform(next(keys), (1, 4 * H),
                                      minval=-k, maxval=k)
            per_dir.append((w_ih, w_hh, b_ih + b_hh))    # biases appear summed
        (wif, whf, bf), (wib, whb, bb) = per_dir

        # Gate-interleaved column packing: [i_f i_b f_f f_b g_f g_b o_f o_b].
        w_cols, b_cols = [], []
        for g in range(4):
            w_cols += [wif[:, g * H:(g + 1) * H], wib[:, g * H:(g + 1) * H]]
            b_cols += [bf[:, g * H:(g + 1) * H], bb[:, g * H:(g + 1) * H]]
        w_ih_packed = jnp.concatenate(w_cols, axis=1)    # (in_dim, 8H)
        b_packed = jnp.concatenate(b_cols, axis=1)       # (1, 8H)

        # Block-diagonal recurrent weight: h_fwd rows feed the *_f columns,
        # h_bwd rows feed the *_b columns.
        w_hh_packed = jnp.zeros((2 * H, 8 * H), jnp.float32)
        for g in range(4):
            w_hh_packed = w_hh_packed.at[0:H, (2 * g) * H:(2 * g + 1) * H].set(
                whf[:, g * H:(g + 1) * H])
            w_hh_packed = w_hh_packed.at[H:2 * H, (2 * g + 1) * H:(2 * g + 2) * H].set(
                whb[:, g * H:(g + 1) * H])

        lstm.append({"w_ih": w_ih_packed, "b": b_packed,
                     "w_hh": w_hh_packed, "hidden": H})
        in_dim = 2 * H
    params["lstm"] = lstm

    ws, bs = [], []
    for c in n_classes:
        scope = math.sqrt(6.0 / (c + 2 * H))             # matches init_linear
        ws.append(jax.random.uniform(next(keys), (2 * H, c),
                                     minval=-scope, maxval=scope))
        bs.append(jnp.zeros((1, c), jnp.float32))        # bias zeroed
    params["head_w"] = jnp.concatenate(ws, axis=1)       # (2H, Ctot)
    params["head_b"] = jnp.concatenate(bs, axis=1)       # (1, Ctot)
    return params


# -------------------------------------- main ------------------------------------
if __name__ == "__main__":
    B, T = 2, 8
    VOCAB, EMBED_DIM, HIDDEN = 50, 32, 32
    N_LAYER = 2
    N_CLASSES = (5, 7, 9)

    key = jax.random.PRNGKey(0)
    kp, kx, k1, k2, k3 = jax.random.split(key, 5)

    params = init_params(kp, VOCAB, EMBED_DIM, HIDDEN, N_LAYER, N_CLASSES)
    x = jax.random.randint(kx, (B, T), 0, VOCAB, dtype=jnp.int32)
    y1 = jax.random.randint(k1, (B, T), 0, N_CLASSES[0], dtype=jnp.int32)
    y2 = jax.random.randint(k2, (B, T), 0, N_CLASSES[1], dtype=jnp.int32)
    y3 = jax.random.randint(k3, (B, T), 0, N_CLASSES[2], dtype=jnp.int32)
    mask = jnp.ones((B, T), dtype=bool)

    losses, preds = bilstm_forward(params, x, y1, y2, y3, mask)
    jax.block_until_ready((losses, preds))
    print("KERNEL_OK")
</pallas_src>

<mosaic_0001>
module attributes {stable_mosaic.version = 11 : i64} {
  func.func @_linear_kernel(%arg0: i32, %arg1: memref<16x32xf32, #tpu.memory_space<vmem>>, %arg2: memref<32x256xf32, #tpu.memory_space<vmem>>, %arg3: memref<1x256xf32, #tpu.memory_space<vmem>>, %arg4: memref<16x256xf32, #tpu.memory_space<vmem>>) attributes {dimension_semantics = [#tpu.dimension_semantics<parallel>], iteration_bounds = array<i64: 1>, scalar_prefetch = 0 : i64, scratch_operands = 0 : i64, tpu.core_type = #tpu.core_type<tc>, window_params = [{transform_indices = @transform_0, window_bounds = array<i64: 16, 32>}, {pipeline_mode = #tpu.pipeline_mode<synchronous>, transform_indices = @transform_1, window_bounds = array<i64: 32, 256>}, {pipeline_mode = #tpu.pipeline_mode<synchronous>, transform_indices = @transform_2, window_bounds = array<i64: 1, 256>}, {transform_indices = @transform_3, window_bounds = array<i64: 16, 256>}]} {
    %c0 = arith.constant 0 : index
    %c0_0 = arith.constant 0 : index
    %0 = vector.load %arg1[%c0, %c0_0] : memref<16x32xf32, #tpu.memory_space<vmem>>, vector<16x32xf32>
    %c0_1 = arith.constant 0 : index
    %c0_2 = arith.constant 0 : index
    %1 = vector.load %arg2[%c0_1, %c0_2] : memref<32x256xf32, #tpu.memory_space<vmem>>, vector<32x256xf32>
    %cst = arith.constant dense<0.000000e+00> : vector<16x256xf32>
    %2 = tpu.matmul %0, %1, %cst {dimension_numbers = #tpu.dot_dimension_numbers<[1], [0], [0], [1], [0, 0, 1, 1], [], []>} : vector<16x32xf32>, vector<32x256xf32>, vector<16x256xf32> -> vector<16x256xf32>
    %c0_3 = arith.constant 0 : index
    %c0_4 = arith.constant 0 : index
    %3 = vector.load %arg3[%c0_3, %c0_4] : memref<1x256xf32, #tpu.memory_space<vmem>>, vector<1x256xf32>
    %4 = vector.broadcast %3 : vector<1x256xf32> to vector<16x256xf32>
    %5 = arith.addf %2, %4 : vector<16x256xf32>
    %c0_5 = arith.constant 0 : index
    %c0_6 = arith.constant 0 : index
    %6 = vector.load %arg4[%c0_5, %c0_6] : memref<16x256xf32, #tpu.memory_space<vmem>>, vector<16x256xf32>
    tpu.vector_store %arg4[%c0_5, %c0_6], %5 {strides = array<i32>} : memref<16x256xf32, #tpu.memory_space<vmem>>, vector<16x256xf32>,
    return
  }
  func.func @transform_0(%arg0: i32) -> (i32, i32) {
    %c0_i32 = arith.constant 0 : i32
    %c0_i32_0 = arith.constant 0 : i32
    return %arg0, %c0_i32 : i32, i32
  }
  func.func @transform_1(%arg0: i32) -> (i32, i32) {
    %c0_i32 = arith.constant 0 : i32
    %c0_i32_0 = arith.constant 0 : i32
    %c0_i32_1 = arith.constant 0 : i32
    return %c0_i32, %c0_i32_0 : i32, i32
  }
  func.func @transform_2(%arg0: i32) -> (i32, i32) {
    %c0_i32 = arith.constant 0 : i32
    %c0_i32_0 = arith.constant 0 : i32
    %c0_i32_1 = arith.constant 0 : i32
    return %c0_i32, %c0_i32_0 : i32, i32
  }
  func.func @transform_3(%arg0: i32) -> (i32, i32) {
    %c0_i32 = arith.constant 0 : i32
    %c0_i32_0 = arith.constant 0 : i32
    return %arg0, %c0_i32 : i32, i32
  }
}

</mosaic_0001>

<llo_original>
// kernel: tpu_custom_call.1
$region0: #{tpu_custom_call.1}
  #allocation0 [shape = 'u32[]', space=smem, size = 0x4, offset = 0x4, fixed_abs, tag = 'smem constant byte address 0x4 - core index']
  #allocation1 [shape = 'u32[144,128]{1,0:T(1,128)}', space=vmem, size = 0x12000, scoped, tag = 'internal scratch']
  %s0 = inlined_call_operand.hbm [shape: f32[16,32], index: 0, kind: input, shape index: {}]
  %s1 = inlined_call_operand.hbm [shape: f32[32,256], index: 1, kind: input, shape index: {}]
  %s2 = inlined_call_operand.vmem [shape: f32[1,256], index: 2, kind: input, shape index: {}]
  %s3 = inlined_call_operand.hbm [shape: f32[16,256], index: 3, kind: output, shape index: {}]
  %s4 = sld [smem:[#allocation0]]
  $region30: #{tpu_custom_call.1} parent=0
    _
  %s6 = ssub.s32 1, %s4
  %s7 = scalar_select 0, %s6, %s4
  $region1: #{tpu_custom_call.1} parent=0
    #allocation2 [shape = 'u8[8192]{0}', space=vmem, size = 0x2000, scoped, tag = 'input window, operand 0, single buffered']
    #allocation3 [shape = 's32[1]{0}', space=sflag, size = 0x4, scoped, tag = 'scoped memory for tpu_custom_call.1']
    #allocation4 [shape = 's32[1]{0}', space=sflag, size = 0x4, scoped, tag = 'scoped memory for tpu_custom_call.1']
    #allocation5 [shape = 'u8[32768]{0}', space=vmem, size = 0x8000, scoped, tag = 'input window, operand 1, single buffered']
    #allocation6 [shape = 's32[1]{0}', space=sflag, size = 0x4, scoped, tag = 'scoped memory for tpu_custom_call.1']
    #allocation7 [shape = 'u8[16384]{0}', space=vmem, size = 0x4000, scoped, tag = 'output window, operand 0, single buffered']
    %8 = vsyncpa [#allocation3], 0
    %9 = vsyncpa [#allocation6], 0
    %10 = vsyncpa [#allocation4], 0
    // Predicated region
    $region2: #{tpu_custom_call.1} parent=1 // pred_check
      _
    $region3: #{tpu_custom_call.1} parent=1 // pred_check_branch
      %12 = sbr.rel (0) target = $region5
    $region4: #{tpu_custom_call.1} parent=1 // pred_region
      %s14 = ssub.s32 256, 256
      %15 = vsyncadd [#allocation3], %s14
      %s16 = sshll.u32 [#allocation2], 4
      %s17 = int_to_ptr.vmem [resolvable:$true] %s16
      %22 = dma.hbm_to_vmem [thread:$0]  %s0, 256, %s17, [#allocation3], 128, 128, 8
    $region5: #{tpu_custom_call.1} parent=1 // pred_fallthru
      _
    // Predicated region
    $region6: #{tpu_custom_call.1} parent=1 // pred_check
      _
    $region7: #{tpu_custom_call.1} parent=1 // pred_check_branch
      %24 = sbr.rel (0) target = $region9
    $region8: #{tpu_custom_call.1} parent=1 // pred_region
      %s26 = ssub.s32 1024, 1024
      %27 = vsyncadd [#allocation6], %s26
      %s28 = sshll.u32 [#allocation5], 4
      %s29 = int_to_ptr.vmem [resolvable:$true] %s28
      %34 = dma.hbm_to_vmem [thread:$0]  %s1, 1024, %s29, [#allocation6], 256, 256, 16
    $region9: #{tpu_custom_call.1} parent=1 // pred_fallthru
      _
    // Predicated region
    $region10: #{tpu_custom_call.1} parent=1 // pred_check
      _
    $region11: #{tpu_custom_call.1} parent=1 // pred_check_branch
      %36 = sbr.rel (0) target = $region13
    $region12: #{tpu_custom_call.1} parent=1 // pred_region
      _
    $region13: #{tpu_custom_call.1} parent=1 // pred_fallthru
      _
    // Predicated region
    $region14: #{tpu_custom_call.1} parent=1 // pred_check
      _
    $region15: #{tpu_custom_call.1} parent=1 // pred_check_branch
      %38 = sbr.rel (0) target = $region17
    $region16: #{tpu_custom_call.1} parent=1 // pred_region
      %39 = dma.done [#allocation3], 256
    $region17: #{tpu_custom_call.1} parent=1 // pred_fallthru
      _
    // Predicated region
    $region18: #{tpu_custom_call.1} parent=1 // pred_check
      _
    $region19: #{tpu_custom_call.1} parent=1 // pred_check_branch
      %41 = sbr.rel (0) target = $region21
    $region20: #{tpu_custom_call.1} parent=1 // pred_region
      %42 = dma.done [#allocation6], 1024
    $region21: #{tpu_custom_call.1} parent=1 // pred_fallthru
      _
    %v43 = vld [vmem:[#allocation2] sm:$0xff]
    %v44 = vld [vmem:[#allocation2 + $0x8] sm:$0xff]
    %v45 = vld [vmem:[#allocation5] sm:$0xff]
    %v46 = vld [vmem:[#allocation5 + $0x8] sm:$0xff]
    %v47 = vld [vmem:[#allocation5 + $0x10] sm:$0xff]
    %v48 = vld [vmem:[#allocation5 + $0x18] sm:$0xff]
    %v49 = vld [vmem:[#allocation5 + $0x20] sm:$0xff]
    %v50 = vld [vmem:[#allocation5 + $0x28] sm:$0xff]
    %v51 = vld [vmem:[#allocation5 + $0x30] sm:$0xff]
    %v52 = vld [vmem:[#allocation5 + $0x38] sm:$0xff]
    %v53 = vld [vmem:[%s2] sm:$0x3]
    %v55 = vlaneseq
    %v56 = vshrl.u32 %v55, 7
    %v57 = vsub.s32 0, %v56
    %v58 = vrot.slane %v53, %v57
    %v59 = vlaneseq
    %v60 = vshrl.u32 %v59, 7
    %v61 = vsub.s32 1, %v60
    %v62 = vrot.slane %v53, %v61
    %vm65 = vcmask 261120
    %v67 = vsel %vm65, %v43, 0
    %v70 = vsel %vm65, %v44, 0
    %72 = vmatprep.subr.mxu0 %v46
    %73 = vmatpush1.msra.mxu0 %v45
    %74 = vmatprep.subr.mxu0 %v48
    %75 = vmatpush1.msra.mxu0 %v47
    %76 = vmatprep.subr.mxu0 %v50
    %77 = vmatpush1.msra.mxu0 %v49
    %78 = vmatprep.subr.mxu0 %v52
    %79 = vmatpush1.msra.mxu0 %v51
    %80 = vmatprep.subr.mxu0 0.0
    %81 = vmatpush1.msra.mxu0 0.0
    %82 = vmatprep.subr.mxu0 0.0
    %83 = vmatpush1.msra.mxu0 0.0
    %84 = vmatprep.subr.mxu0 0.0
    %85 = vmatpush1.msra.mxu0 0.0
    %86 = vmatprep.subr.mxu0 0.0
    %87 = vmatpush1.msra.mxu0 0.0
    %88 = vmatprep.subr.mxu0 0.0
    %89 = vmatpush1.msra.mxu0 0.0
    %90 = vmatprep.subr.mxu0 0.0
    %91 = vmatpush1.msra.mxu0 0.0
    %92 = vmatprep.subr.mxu0 0.0
    %93 = vmatpush1.msra.mxu0 0.0
    %94 = vmatprep.subr.mxu0 0.0
    %95 = vmatpush1.msra.mxu0 0.0
    %96 = vmatprep.subr.mxu0 0.0
    %97 = vmatpush1.msra.mxu0 0.0
    %98 = vmatprep.subr.mxu0 0.0
    %99 = vmatpush1.msra.mxu0 0.0
    %100 = vmatprep.subr.mxu0 0.0
    %101 = vmatpush1.msra.mxu0 0.0
    %102 = vmatprep.subr.mxu0 0.0
    %103 = vmatpush1.msra.mxu0 0.0
    %104 = vmatprep.subr.mxu0 0.0
    %105 = vmatpush1.msra.mxu0 0.0
    %106 = vmatprep.subr.mxu0 0.0
    %107 = vmatpush1.msra.mxu0 0.0
    %108 = vmatprep.subr.mxu0 0.0
    %109 = vmatpush1.msra.mxu0 0.0
    %110 = vmatprep.subr.mxu0 0.0
    %111 = vmatpush1.msra.mxu0 0.0
    %112 = vmatprep.subr.mxu0 0.0
    %113 = vmatpush1.msra.mxu0 0.0
    %114 = vmatprep.subr.mxu0 0.0
    %115 = vmatpush1.msra.mxu0 0.0
    %116 = vmatprep.subr.mxu0 0.0
    %117 = vmatpush1.msra.mxu0 0.0
    %118 = vmatprep.subr.mxu0 0.0
    %119 = vmatpush1.msra.mxu0 0.0
    %120 = vmatprep.subr.mxu0 0.0
    %121 = vmatpush1.msra.mxu0 0.0
    %122 = vmatprep.subr.mxu0 0.0
    %123 = vmatpush1.msra.mxu0 0.0
    %124 = vmatprep.subr.mxu0 0.0
    %125 = vmatpush1.msra.mxu0 0.0
    %126 = vmatprep.subr.mxu0 0.0
    %127 = vmatpush1.msra.mxu0 0.0
    %128 = vmatprep.subr.mxu0 0.0
    %129 = vmatpush1.msra.mxu0 0.0
    %130 = vmatprep.subr.mxu0 0.0
    %131 = vmatpush1.msra.mxu0 0.0
    %132 = vmatprep.subr.mxu0 0.0
    %133 = vmatpush1.msra.mxu0 0.0
    %134 = vmatprep.subr.mxu0 0.0
    %135 = vmatpush1.msra.mxu0 0.0
    %136 = vmatprep.mubr.f32.mxu0 0.0
    %137 = vmatmul.mubr.f32.gmra.mrb[0].mxu0 %v67
    %v138 = vpop.f32.mrb[0].mxu0
    %v139 = vadd.f32 %v58, %v138
    %v140 = vpop.f32.mrb[0].mxu0
    %v141 = vadd.f32 %v62, %v140
    %142 = vmatprep.mubr.f32.mxu0 0.0
    %143 = vmatmul.mubr.f32.gmra.mrb[0].mxu0 %v70
    %v144 = vpop.f32.mrb[0].mxu0
    %v145 = vadd.f32 %v58, %v144
    %v146 = vpop.f32.mrb[0].mxu0
    %v147 = vadd.f32 %v62, %v146
    %148 = vdwg.mxu0
    %149 = vst [vmem:[#allocation7] sm:$0xff] %v139
    %150 = vst [vmem:[#allocation7 + $0x8] sm:$0xff] %v141
    %151 = vst [vmem:[#allocation7 + $0x10] sm:$0xff] %v145
    %152 = vst [vmem:[#allocation7 + $0x18] sm:$0xff] %v147
    // Predicated region
    $region22: #{tpu_custom_call.1} parent=1 // pred_check
      _
    $region23: #{tpu_custom_call.1} parent=1 // pred_check_branch
      %154 = sbr.rel (0) target = $region25
    $region24: #{tpu_custom_call.1} parent=1 // pred_region
      %s156 = ssub.s32 512, 512
      %157 = vsyncadd [#allocation4], %s156
      %s158 = sshll.u32 [#allocation7], 4
      %s159 = int_to_ptr.vmem [resolvable:$true] %s158
      %164 = dma.vmem_to_hbm [thread:$0]  %s159, 512, %s3, [#allocation4], 256, 256, 16
    $region25: #{tpu_custom_call.1} parent=1 // pred_fallthru
      _
    // Predicated region
    $region26: #{tpu_custom_call.1} parent=1 // pred_check
      _
    $region27: #{tpu_custom_call.1} parent=1 // pred_check_branch
      %166 = sbr.rel (0) target = $region29
    $region28: #{tpu_custom_call.1} parent=1 // pred_region
      %167 = dma.done [#allocation4], 512
    $region29: #{tpu_custom_call.1} parent=1 // pred_fallthru
      _
    %168 = vsyncpa [#allocation3], 1
    %169 = vsyncpa [#allocation6], 1
    %170 = vsyncpa [#allocation4], 1

</llo_original>
